<compile_context>
chip_gen: v7x
topology: tpu7x:2x2x1
jax: 0.10.0
libtpu: 0.0.40
codegen_flags: <defaults>
</compile_context>

<pallas_src>
import numpy as np
import jax
import jax.numpy as jnp
from jax.experimental import pallas as pl
from jax.experimental.pallas import tpu as pltpu


# ----------------------------------------------------------------------------
# Operator construction (host side, tiny)
# ----------------------------------------------------------------------------

def _binomial_1d(filt_size: int) -> np.ndarray:
    table = {
        1: [1.0],
        2: [1.0, 1.0],
        3: [1.0, 2.0, 1.0],
        4: [1.0, 3.0, 3.0, 1.0],
        5: [1.0, 4.0, 6.0, 4.0, 1.0],
        6: [1.0, 5.0, 10.0, 10.0, 5.0, 1.0],
        7: [1.0, 6.0, 15.0, 20.0, 15.0, 6.0, 1.0],
    }
    return np.array(table[filt_size], dtype=np.float64)


def _strided_conv_matrix(out_size: int, in_size: int, taps: np.ndarray,
                         stride: int) -> np.ndarray:
    """A[i, stride*i + k] = taps[k]; out = A @ x implements the 1-D strided conv."""
    fs = taps.shape[0]
    A = np.zeros((out_size, in_size), dtype=np.float32)
    for i in range(out_size):
        A[i, stride * i: stride * i + fs] = taps
    return A


# ----------------------------------------------------------------------------
# VMEM / blocking heuristics (generation-aware)
# ----------------------------------------------------------------------------

def _vmem_limit_bytes() -> int:
    """Scoped-VMEM limit handed to the compiler, derived from physical VMEM."""
    phys = 64 * 1024 * 1024  # conservative default = v7x per-TensorCore VMEM
    try:
        phys = int(pltpu.get_tpu_info().vmem_capacity_bytes)
    except Exception:
        pass
    # ~75% of physical, capped at 96 MiB:  v5e/v6e (128 MiB) -> 96 MiB,
    # v7x (64 MiB) -> 48 MiB.  Same value is used (scaled) by the block chooser.
    return min((phys * 3) // 4, 96 * 1024 * 1024)


def _choose_channel_block(nc, h, w, ho, wo, in_isz, out_isz, budget,
                          target_steps=8):
    """Channel-block size B for a ceil-div grid over the N*C flattened axis.

    Picks the largest B whose per-step VMEM footprint fits `budget`, then caps
    it so the grid has >= min(target_steps, nc) steps (>= 4 per TensorCore on
    v7x's two cores keeps the double-buffer pipeline busy; per-step overhead is
    only ~0.35 us so more/smaller steps are strictly better when mem-bound),
    preferring an even total step count.
    """
    def lanes(n):  # lane padding (last dim)
        return -(-n // 128) * 128

    def subs(n):   # sublane padding (second-to-last dim)
        return -(-n // 8) * 8

    def footprint(b):
        x_blk = b * subs(h) * lanes(w) * in_isz       # input block
        t_blk = b * subs(h) * lanes(wo) * 4           # f32 col-pass intermediate
        ah_b = b * subs(ho) * lanes(h) * in_isz       # in-kernel A_h broadcast
        o_blk = b * subs(ho) * lanes(wo) * out_isz    # output block
        ops = (subs(w) * lanes(wo) + subs(ho) * lanes(h)) * in_isz
        # input/output blocks are double-buffered by the BlockSpec pipeline
        return 2 * (x_blk + o_blk) + t_blk + ah_b + 2 * ops

    b_vmem = 1
    for b in range(1, nc + 1):            # footprint is monotonic in b
        if footprint(b) <= budget:
            b_vmem = b
        else:
            break

    desired = max(1, min(target_steps, nc))
    b_steps = max(1, nc // desired)
    b = max(1, min(b_vmem, b_steps))

    steps = -(-nc // b)
    if steps > 1 and steps % 2 == 1:      # prefer an even total (v7x: 2 TCs)
        b_even = max(1, -(-nc // (steps + 1)))
        if (-(-nc // b_even)) % 2 == 0 and footprint(b_even) <= budget:
            b = b_even
    return b


# ----------------------------------------------------------------------------
# Kernel
# ----------------------------------------------------------------------------

def _blurpool_kernel(x_ref, awt_ref, ah_ref, o_ref):
    # x_ref  : (B, H, W)   block of B channel planes (unpadded input)
    # awt_ref: (W, Wo)     column blur + stride operator, pre-transposed
    # ah_ref : (Ho, H)     row blur + stride operator (zero padding folded in)
    # o_ref  : (B, Ho, Wo)
    b, h, w = x_ref.shape
    ho = ah_ref.shape[0]
    wo = awt_ref.shape[1]
    cdt = x_ref.dtype  # staging/compute dtype (f32, or bf16 when use_bf16)

    if h % 8 == 0:
        # Column pass as one MXU-shaped 2-D GEMM: M = B*H, K = W, N = Wo.
        # Reshape is tile-aligned (H is a sublane multiple, lane dim W fixed).
        x2 = x_ref[...].reshape(b * h, w)
        t1 = jnp.dot(x2, awt_ref[...], preferred_element_type=jnp.float32)
        t1 = t1.reshape(b, h, wo)
    else:
        # Fallback: batched matmul; avoids a tile-crossing reshape relayout.
        awt_b = jnp.broadcast_to(awt_ref[...][None, :, :], (b, w, wo))
        t1 = jnp.einsum('bhw,bwp->bhp', x_ref[...], awt_b,
                        preferred_element_type=jnp.float32)

    # Row pass: batched matmul with the (Ho, H) operator broadcast in-kernel
    # (no B-times-replicated operand in HBM / DMA — review item 1).
    ah_b = jnp.broadcast_to(ah_ref[...][None, :, :], (b, ho, h))
    out = jnp.einsum('boh,bhp->bop', ah_b, t1.astype(cdt),
                     preferred_element_type=jnp.float32)
    o_ref[...] = out.astype(o_ref.dtype)


# ----------------------------------------------------------------------------
# Wrapper
# ----------------------------------------------------------------------------

def blurpool(x: jax.Array, in_ch: int, filt_size: int = 3, stride: int = 2,
             pad_off: int = 0, *, use_bf16: bool = False,
             channel_block: int | None = None) -> jax.Array:
    """x: (N, C, H, W). Returns (N, C, Ho, Wo). Matches BlurPool.forward.

    use_bf16=True stages the input and operator matrices in bf16 (f32 MXU
    accumulation) — an opt-in ~2x HBM-traffic saving that relaxes parity from
    ~1e-5 to ~1e-3 relative error.
    """
    N, C, H, W = x.shape
    assert C == in_ch
    out_dtype = x.dtype

    # Padding exactly as nn.ZeroPad2d(pad_sizes), pad_sizes = [l, r, t, b].
    pad_l = int(1.0 * (filt_size - 1) / 2) + pad_off
    pad_r = int(np.ceil(1.0 * (filt_size - 1) / 2)) + pad_off
    pad_t = int(1.0 * (filt_size - 1) / 2) + pad_off
    pad_b = int(np.ceil(1.0 * (filt_size - 1) / 2)) + pad_off
    H_pad, W_pad = H + pad_t + pad_b, W + pad_l + pad_r
    Ho = (H_pad - filt_size) // stride + 1
    Wo = (W_pad - filt_size) // stride + 1

    # Normalized separable binomial taps; fold the zero padding into the
    # operators by dropping columns that hit padded (zero) rows/cols.
    a = _binomial_1d(filt_size)
    taps = (a / a.sum()).astype(np.float32)
    A_h = _strided_conv_matrix(Ho, H_pad, taps, stride)[:, pad_t:pad_t + H]   # (Ho, H)
    A_w = _strided_conv_matrix(Wo, W_pad, taps, stride)[:, pad_l:pad_l + W]   # (Wo, W)
    A_wT = np.ascontiguousarray(A_w.T)                                        # (W, Wo)

    compute_dtype = jnp.bfloat16 if use_bf16 else x.dtype
    in_isz = jnp.dtype(compute_dtype).itemsize
    out_isz = jnp.dtype(out_dtype).itemsize

    NC = N * C
    vmem_limit = _vmem_limit_bytes()
    vmem_budget = int(vmem_limit * 0.7)       # headroom for temporaries/pipeline
    if channel_block is not None:
        B = max(1, min(int(channel_block), NC))
    else:
        B = _choose_channel_block(NC, H, W, Ho, Wo, in_isz, out_isz, vmem_budget)
    G = pl.cdiv(NC, B)                        # ceil-div grid; tail block masked

    x_nc = x.reshape(NC, H, W).astype(compute_dtype)   # free reshape, no pad pass
    awt = jnp.asarray(A_wT, dtype=compute_dtype)
    ah = jnp.asarray(A_h, dtype=compute_dtype)

    # TODO(synk): channels-last (NHWC) path for small-W / large-C stages so C
    # sits on the 128-lane axis; the NCHW path below is kept for W >= 128-ish.
    out = pl.pallas_call(
        _blurpool_kernel,
        out_shape=jax.ShapeDtypeStruct((NC, Ho, Wo), out_dtype),
        grid_spec=pltpu.PrefetchScalarGridSpec(
            num_scalar_prefetch=0,
            grid=(G,),
            in_specs=[
                pl.BlockSpec((B, H, W), lambda i: (i, 0, 0)),
                pl.BlockSpec((W, Wo), lambda i: (0, 0)),    # constant block
                pl.BlockSpec((Ho, H), lambda i: (0, 0)),    # constant block
            ],
            out_specs=pl.BlockSpec((B, Ho, Wo), lambda i: (i, 0, 0)),
        ),
        compiler_params=pltpu.CompilerParams(
            dimension_semantics=("parallel",),
            vmem_limit_bytes=int(vmem_limit),
        ),
    )(x_nc, awt, ah)
    return out.reshape(N, C, Ho, Wo)


# ----------------------------------------------------------------------------
# Pure numpy reference (matches the PyTorch module)
# ----------------------------------------------------------------------------

def _reference_blurpool_numpy(x, filt_size=3, stride=2, pad_off=0):
    N, C, H, W = x.shape
    pad_l = int(1.0 * (filt_size - 1) / 2) + pad_off
    pad_r = int(np.ceil(1.0 * (filt_size - 1) / 2)) + pad_off
    pad_t, pad_b = pad_l, pad_r
    a = _binomial_1d(filt_size)
    filt2d = a[:, None] * a[None, :]
    filt2d = (filt2d / filt2d.sum()).astype(np.float32)
    xp = np.pad(x, ((0, 0), (0, 0), (pad_t, pad_b), (pad_l, pad_r)))
    Hp, Wp = xp.shape[2], xp.shape[3]
    Ho = (Hp - filt_size) // stride + 1
    Wo = (Wp - filt_size) // stride + 1
    out = np.zeros((N, C, Ho, Wo), dtype=np.float32)
    for i in range(Ho):
        for j in range(Wo):
            win = xp[:, :, stride * i:stride * i + filt_size,
                     stride * j:stride * j + filt_size]
            out[:, :, i, j] = np.sum(win * filt2d[None, None], axis=(2, 3))
    return out


if __name__ == "__main__":
    key = jax.random.PRNGKey(0)

    # 1) Primary check: exact-parity f32 path at the module's nominal shape.
    N, C, H, W = 2, 4, 16, 16
    x = jax.random.normal(key, (N, C, H, W), dtype=jnp.float32)
    ref = _reference_blurpool_numpy(np.asarray(x))

    out = jax.block_until_ready(blurpool(x, in_ch=C, filt_size=3, stride=2))
    assert out.shape == ref.shape, (out.shape, ref.shape)
    np.testing.assert_allclose(np.asarray(out), ref, rtol=1e-5, atol=1e-5)

    # 2) Ceil-div grid with a partial tail block (B does not divide N*C).
    out_tail = jax.block_until_ready(blurpool(x, in_ch=C, channel_block=3))
    np.testing.assert_allclose(np.asarray(out_tail), ref, rtol=1e-5, atol=1e-5)

    # 3) H not a sublane multiple -> batched-matmul fallback path.
    x2 = jax.random.normal(jax.random.PRNGKey(1), (1, 3, 12, 20), dtype=jnp.float32)
    ref2 = _reference_blurpool_numpy(np.asarray(x2))
    out2 = jax.block_until_ready(blurpool(x2, in_ch=3))
    np.testing.assert_allclose(np.asarray(out2), ref2, rtol=1e-5, atol=1e-5)

    # 4) Opt-in bf16 staging (HBM-bandwidth lever); relaxed tolerance by design.
    out_bf16 = jax.block_until_ready(blurpool(x, in_ch=C, use_bf16=True))
    np.testing.assert_allclose(np.asarray(out_bf16), ref, rtol=5e-2, atol=5e-2)

    print("KERNEL_OK")
</pallas_src>

<mosaic_0001>
module attributes {stable_mosaic.version = 11 : i64} {
  func.func @_blurpool_kernel(%arg0: i32, %arg1: memref<1x16x16xf32, #tpu.memory_space<vmem>>, %arg2: memref<16x8xf32, #tpu.memory_space<vmem>>, %arg3: memref<8x16xf32, #tpu.memory_space<vmem>>, %arg4: memref<1x8x8xf32, #tpu.memory_space<vmem>>) attributes {dimension_semantics = [#tpu.dimension_semantics<parallel>], iteration_bounds = array<i64: 8>, scalar_prefetch = 0 : i64, scratch_operands = 0 : i64, tpu.core_type = #tpu.core_type<tc>, window_params = [{transform_indices = @transform_0, window_bounds = array<i64: 1, 16, 16>}, {pipeline_mode = #tpu.pipeline_mode<synchronous>, transform_indices = @transform_1, window_bounds = array<i64: 16, 8>}, {pipeline_mode = #tpu.pipeline_mode<synchronous>, transform_indices = @transform_2, window_bounds = array<i64: 8, 16>}, {transform_indices = @transform_3, window_bounds = array<i64: 1, 8, 8>}]} {
    %c0 = arith.constant 0 : index
    %c0_0 = arith.constant 0 : index
    %c0_1 = arith.constant 0 : index
    %0 = vector.load %arg1[%c0, %c0_0, %c0_1] : memref<1x16x16xf32, #tpu.memory_space<vmem>>, vector<1x16x16xf32>
    %1 = vector.shape_cast %0 : vector<1x16x16xf32> to vector<16x16xf32>
    %c0_2 = arith.constant 0 : index
    %c0_3 = arith.constant 0 : index
    %2 = vector.load %arg2[%c0_2, %c0_3] : memref<16x8xf32, #tpu.memory_space<vmem>>, vector<16x8xf32>
    %cst = arith.constant dense<0.000000e+00> : vector<16x8xf32>
    %3 = tpu.matmul %1, %2, %cst {dimension_numbers = #tpu.dot_dimension_numbers<[1], [0], [0], [1], [0, 0, 1, 1], [], []>} : vector<16x16xf32>, vector<16x8xf32>, vector<16x8xf32> -> vector<16x8xf32>
    %4 = vector.shape_cast %3 : vector<16x8xf32> to vector<1x16x8xf32>
    %c0_4 = arith.constant 0 : index
    %c0_5 = arith.constant 0 : index
    %5 = vector.load %arg3[%c0_4, %c0_5] : memref<8x16xf32, #tpu.memory_space<vmem>>, vector<8x16xf32>
    %6 = vector.shape_cast %5 : vector<8x16xf32> to vector<1x8x16xf32>
    "tpu.trace_start"() <{level = 10 : i32, message = "boh,bhp->bop"}> : () -> ()
    %cst_6 = arith.constant dense<0.000000e+00> : vector<1x8x8xf32>
    %7 = tpu.matmul %6, %4, %cst_6 {dimension_numbers = #tpu.dot_dimension_numbers<[2], [1], [1], [2], [0, 0, 0, 1, 1, 2], [0], [0]>} : vector<1x8x16xf32>, vector<1x16x8xf32>, vector<1x8x8xf32> -> vector<1x8x8xf32>
    "tpu.trace_stop"() : () -> ()
    %c0_7 = arith.constant 0 : index
    %c0_8 = arith.constant 0 : index
    %c0_9 = arith.constant 0 : index
    %8 = vector.load %arg4[%c0_7, %c0_8, %c0_9] : memref<1x8x8xf32, #tpu.memory_space<vmem>>, vector<1x8x8xf32>
    tpu.vector_store %arg4[%c0_7, %c0_8, %c0_9], %7 {strides = array<i32>} : memref<1x8x8xf32, #tpu.memory_space<vmem>>, vector<1x8x8xf32>,
    return
  }
  func.func @transform_0(%arg0: i32) -> (i32, i32, i32) {
    %c0_i32 = arith.constant 0 : i32
    %c0_i32_0 = arith.constant 0 : i32
    %c0_i32_1 = arith.constant 0 : i32
    return %arg0, %c0_i32, %c0_i32_0 : i32, i32, i32
  }
  func.func @transform_1(%arg0: i32) -> (i32, i32) {
    %c0_i32 = arith.constant 0 : i32
    %c0_i32_0 = arith.constant 0 : i32
    %c0_i32_1 = arith.constant 0 : i32
    return %c0_i32, %c0_i32_0 : i32, i32
  }
  func.func @transform_2(%arg0: i32) -> (i32, i32) {
    %c0_i32 = arith.constant 0 : i32
    %c0_i32_0 = arith.constant 0 : i32
    %c0_i32_1 = arith.constant 0 : i32
    return %c0_i32, %c0_i32_0 : i32, i32
  }
  func.func @transform_3(%arg0: i32) -> (i32, i32, i32) {
    %c0_i32 = arith.constant 0 : i32
    %c0_i32_0 = arith.constant 0 : i32
    %c0_i32_1 = arith.constant 0 : i32
    return %arg0, %c0_i32, %c0_i32_0 : i32, i32, i32
  }
}

</mosaic_0001>

<llo_original>
// kernel: tpu_custom_call.1
$region0: #{tpu_custom_call.1}
  #allocation0 [shape = 'u32[]', space=smem, size = 0x4, offset = 0x4, fixed_abs, tag = 'smem constant byte address 0x4 - core index']
  #allocation1 [shape = 'u32[144,128]{1,0:T(1,128)}', space=vmem, size = 0x12000, scoped, tag = 'internal scratch']
  %s0 = inlined_call_operand.hbm [shape: f32[8,16,16], index: 0, kind: input, shape index: {}]
  %s1 = inlined_call_operand.vmem [shape: f32[16,8], index: 1, kind: input, shape index: {}]
  %s2 = inlined_call_operand.vmem [shape: f32[8,16], index: 2, kind: input, shape index: {}]
  %s3 = inlined_call_operand.hbm [shape: f32[8,8,8], index: 3, kind: output, shape index: {}]
  %s4 = sld [smem:[#allocation0]]
  $region49: #{tpu_custom_call.1} parent=0
    _
  %s6 = ssub.s32 1, %s4
  %s7 = scalar_select 0, %s6, %s4
  $region1: #{tpu_custom_call.1} parent=0
    #allocation2 [shape = 'u8[16384]{0}', space=vmem, size = 0x4000, scoped, tag = 'input window, operand 0']
    #allocation3 [shape = 's32[2]{0}', space=sflag, size = 0x8, scoped, tag = 'scoped memory for tpu_custom_call.1']
    #allocation4 [shape = 's32[2]{0}', space=sflag, size = 0x8, scoped, tag = 'scoped memory for tpu_custom_call.1']
    #allocation5 [shape = 'u8[8192]{0}', space=vmem, size = 0x2000, scoped, tag = 'output window, operand 0']
    %8 = vsyncpa [#allocation3], 0
    %s9 = scalar_lea.sflag [#allocation3], 1
    %10 = vsyncpa %s9, 0
    %11 = vsyncpa [#allocation4], 0
    %s12 = scalar_lea.sflag [#allocation4], 1
    %13 = vsyncpa %s12, 0
    loop: start=0, step=1, limit=10
    $region2: #{tpu_custom_call.1} parent=1 // loop_pre_header
      _
    $region3: #{tpu_custom_call.1} parent=1 // loop_header
      %s15 = sphi 0, %s19
      %p16 = scmp.ge.s32.totalorder %s15, 10
      %s25 = sphi 0, %s27
      %s28 = sphi 0, %s25
      %s29 = sphi 0, %s28
      %s45 = sphi 0, %s29
      %s49 = sphi 0, %s49
      %s51 = sphi 0, %s49
      %s52 = sphi 0, %s51
      %s66 = sphi 0, %s52
      %s70 = sphi 0, %s70
      %s72 = sphi 0, %s70
      %s73 = sphi 0, %s72
      %s87 = sphi 0, %s73
      %s93 = sphi 0, %s95
      %s96 = sphi 0, %s93
      %s97 = sphi 0, %s96
      %s113 = sphi 0, %s97
    $region4: #{tpu_custom_call.1} parent=1 // loop_header_branch
      %18 = sbr.rel (%p16) target = $region8
    $region5: #{tpu_custom_call.1} parent=1 // loop_body
      %s20 = ssub.s32 %s15, 1
      %s21 = ssub.s32 %s15, 2
      %s22 = sadd.s32 %s15, 1
      %s23 = ssub.s32 %s15, %s22
      %p24 = scmp.eq.s32.totalorder %s23, 0
      %s26 = sadd.s32 %s25, 1
      %s27 = scalar_select %p24, %s25, %s26
      %p30 = pneg %p24
      %p31 = scmp.eq.s32.totalorder %s15, 7
      %p32 = por %p30, %p31
      %p33 = scmp.ne.s32.totalorder %s25, %s28
      %p34 = scmp.eq.s32.totalorder %s15, 0
      %p35 = por %p33, %p34
      %p36 = scmp.ne.s32.totalorder %s25, %s28
      %p37 = scmp.eq.s32.totalorder %s20, 7
      %p38 = por %p36, %p37
      %p39 = scmp.ne.s32.totalorder %s28, %s29
      %p40 = scmp.eq.s32.totalorder %s20, 0
      %p41 = por %p39, %p40
      %p42 = scmp.ne.s32.totalorder %s28, %s29
      %p43 = scmp.eq.s32.totalorder %s21, 7
      %p44 = por %p42, %p43
      %p46 = scmp.ne.s32.totalorder %s29, %s45
      %p47 = scmp.eq.s32.totalorder %s21, 0
      %p48 = por %p46, %p47
      %s50 = sadd.s32 %s49, 1
      %p53 = scmp.eq.s32.totalorder %s15, 7
      %p54 = scmp.ne.s32.totalorder %s49, %s51
      %p55 = scmp.eq.s32.totalorder %s15, 0
      %p56 = por %p54, %p55
      %p57 = scmp.ne.s32.totalorder %s49, %s51
      %p58 = scmp.eq.s32.totalorder %s20, 7
      %p59 = por %p57, %p58
      %p60 = scmp.ne.s32.totalorder %s51, %s52
      %p61 = scmp.eq.s32.totalorder %s20, 0
      %p62 = por %p60, %p61
      %p63 = scmp.ne.s32.totalorder %s51, %s52
      %p64 = scmp.eq.s32.totalorder %s21, 7
      %p65 = por %p63, %p64
      %p67 = scmp.ne.s32.totalorder %s52, %s66
      %p68 = scmp.eq.s32.totalorder %s21, 0
      %p69 = por %p67, %p68
      %s71 = sadd.s32 %s70, 1
      %p74 = scmp.eq.s32.totalorder %s15, 7
      %p75 = scmp.ne.s32.totalorder %s70, %s72
      %p76 = scmp.eq.s32.totalorder %s15, 0
      %p77 = por %p75, %p76
      %p78 = scmp.ne.s32.totalorder %s70, %s72
      %p79 = scmp.eq.s32.totalorder %s20, 7
      %p80 = por %p78, %p79
      %p81 = scmp.ne.s32.totalorder %s72, %s73
      %p82 = scmp.eq.s32.totalorder %s20, 0
      %p83 = por %p81, %p82
      %p84 = scmp.ne.s32.totalorder %s72, %s73
      %p85 = scmp.eq.s32.totalorder %s21, 7
      %p86 = por %p84, %p85
      %p88 = scmp.ne.s32.totalorder %s73, %s87
      %p89 = scmp.eq.s32.totalorder %s21, 0
      %p90 = por %p88, %p89
      %s91 = ssub.s32 %s15, %s22
      %p92 = scmp.eq.s32.totalorder %s91, 0
      %s94 = sadd.s32 %s93, 1
      %s95 = scalar_select %p92, %s93, %s94
      %p98 = pneg %p92
      %p99 = scmp.eq.s32.totalorder %s15, 7
      %p100 = por %p98, %p99
      %p101 = scmp.ne.s32.totalorder %s93, %s96
      %p102 = scmp.eq.s32.totalorder %s15, 0
      %p103 = por %p101, %p102
      %p104 = scmp.ne.s32.totalorder %s93, %s96
      %p105 = scmp.eq.s32.totalorder %s20, 7
      %p106 = por %p104, %p105
      %p107 = scmp.ne.s32.totalorder %s96, %s97
      %p108 = scmp.eq.s32.totalorder %s20, 0
      %p109 = por %p107, %p108
      %p110 = scmp.ne.s32.totalorder %s96, %s97
      %p111 = scmp.eq.s32.totalorder %s21, 7
      %p112 = por %p110, %p111
      %p114 = scmp.ne.s32.totalorder %s97, %s113
      %p115 = scmp.eq.s32.totalorder %s21, 0
      %p116 = por %p114, %p115
      %p117 = scmp.le.s32.totalorder 1, %s15
      %p118 = scmp.lt.s32.totalorder %s15, 9
      %p119 = pnand %p117, %p118
      %p120 = pneg %p119
      // Predicated region
      $region9: #{tpu_custom_call.1} parent=5 // pred_check
        _
      $region10: #{tpu_custom_call.1} parent=5 // pred_check_branch
        %122 = sbr.rel (%p119) target = $region12
      $region11: #{tpu_custom_call.1} parent=5 // pred_region
        %s123 = ssub.s32 %s15, 1
        // Predicated region
        $region13: #{tpu_custom_call.1} parent=11 // pred_check
          %p124 = pneg %p62
        $region14: #{tpu_custom_call.1} parent=11 // pred_check_branch
          %126 = sbr.rel (%p124) target = $region16
        $region15: #{tpu_custom_call.1} parent=11 // pred_region
          _
        $region16: #{tpu_custom_call.1} parent=11 // pred_fallthru
          _
        // Predicated region
        $region17: #{tpu_custom_call.1} parent=11 // pred_check
          %p127 = pneg %p83
        $region18: #{tpu_custom_call.1} parent=11 // pred_check_branch
          %129 = sbr.rel (%p127) target = $region20
        $region19: #{tpu_custom_call.1} parent=11 // pred_region
          _
        $region20: #{tpu_custom_call.1} parent=11 // pred_fallthru
          _
      $region12: #{tpu_custom_call.1} parent=5 // pred_fallthru
        _
      %p130 = scmp.lt.s32.totalorder %s15, 8
      // Predicated region
      $region21: #{tpu_custom_call.1} parent=5 // pred_check
        %p131 = pneg %p130
      $region22: #{tpu_custom_call.1} parent=5 // pred_check_branch
        %133 = sbr.rel (%p131) target = $region24
      $region23: #{tpu_custom_call.1} parent=5 // pred_region
        // Predicated region
        $region25: #{tpu_custom_call.1} parent=23 // pred_check
          %p134 = pneg %p35
        $region26: #{tpu_custom_call.1} parent=23 // pred_check_branch
          %136 = sbr.rel (%p134) target = $region28
        $region27: #{tpu_custom_call.1} parent=23 // pred_region
          %s137 = sand.u32 %s25, 1
          %s138 = scalar_lea.sflag [#allocation3], %s137
          %s139 = sand.u32 %s25, 1
          %s140 = smul.addr %s139, 16
          %s141 = scalar_lea.vmem [#allocation2], %s140
          %s143 = ssub.s32 256, 256
          %144 = vsyncadd %s138, %s143
          %s145 = smul.addr %s15, 2
          %s146 = smul.addr %s145, 128
          %s147 = scalar_lea.hbm %s0, %s146
          %s148 = sshll.u32 %s141, 4
          %s149 = int_to_ptr.vmem [resolvable:$true] %s148
          %154 = dma.hbm_to_vmem [thread:$0]  %s147, 256, %s149, %s138, 128, 128, 8
        $region28: #{tpu_custom_call.1} parent=23 // pred_fallthru
          _
      $region24: #{tpu_custom_call.1} parent=5 // pred_fallthru
        _
      %p155 = scmp.le.s32.totalorder 1, %s15
      %p156 = scmp.lt.s32.totalorder %s15, 9
      %p157 = pnand %p155, %p156
      %p158 = pneg %p157
      // Predicated region
      $region29: #{tpu_custom_call.1} parent=5 // pred_check
        _
      $region30: #{tpu_custom_call.1} parent=5 // pred_check_branch
        %160 = sbr.rel (%p157) target = $region32
      $region31: #{tpu_custom_call.1} parent=5 // pred_region
        %s161 = ssub.s32 %s15, 1
        %s162 = sand.u32 %s28, 1
        %s163 = scalar_lea.sflag [#allocation3], %s162
        %s164 = sand.u32 %s28, 1
        %s165 = smul.addr %s164, 16
        %s166 = scalar_lea.vmem [#allocation2], %s165
        // Predicated region
        $region33: #{tpu_custom_call.1} parent=31 // pred_check
          %p167 = pneg %p41
        $region34: #{tpu_custom_call.1} parent=31 // pred_check_branch
          %169 = sbr.rel (%p167) target = $region36
        $region35: #{tpu_custom_call.1} parent=31 // pred_region
          %170 = dma.done %s163, 256
        $region36: #{tpu_custom_call.1} parent=31 // pred_fallthru
          _
        %s171 = sand.u32 %s28, 1
        %s172 = scalar_lea.sflag [#allocation3], %s171
        %s173 = sand.u32 %s28, 1
        %s174 = smul.addr %s173, 16
        %s175 = scalar_lea.vmem [#allocation2], %s174
        %p176 = pneg %p41
        %p177 = pneg %p38
        %p178 = pneg %p62
        %p179 = pneg %p59
        %p180 = pneg %p83
        %p181 = pneg %p80
        %p182 = pneg %p109
        %p183 = pneg %p106
        %s184 = sand.u32 %s96, 1
        %s185 = scalar_lea.sflag [#allocation4], %s184
        %s186 = sand.u32 %s96, 1
        %s187 = smul.addr %s186, 8
        %s188 = scalar_lea.vmem [#allocation5], %s187
        %v189 = vld [vmem:[%s166] sm:$0xff]
        %v190 = vld [vmem:[%s166 + $0x8] sm:$0xff]
        %v191 = vld [vmem:[%s1] sm:$0xff]
        %v192 = vld [vmem:[%s1 + $0x8] sm:$0xff]
        %vm193 = vcmask 130048
        %v195 = vsel %vm193, %v189, 0
        %v198 = vsel %vm193, %v190, 0
        %200 = vmatprep.subr.mxu0 0.0
        %201 = vmatpush1.msra.mxu0 %v191
        %202 = vmatprep.subr.mxu0 0.0
        %203 = vmatpush1.msra.mxu0 %v192
        %204 = vmatprep.subr.mxu0 0.0
        %205 = vmatpush1.msra.mxu0 0.0
        %206 = vmatprep.subr.mxu0 0.0
        %207 = vmatpush1.msra.mxu0 0.0
        %208 = vmatprep.subr.mxu0 0.0
        %209 = vmatpush1.msra.mxu0 0.0
        %210 = vmatprep.subr.mxu0 0.0
        %211 = vmatpush1.msra.mxu0 0.0
        %212 = vmatprep.subr.mxu0 0.0
        %213 = vmatpush1.msra.mxu0 0.0
        %214 = vmatprep.subr.mxu0 0.0
        %215 = vmatpush1.msra.mxu0 0.0
        %216 = vmatprep.subr.mxu0 0.0
        %217 = vmatpush1.msra.mxu0 0.0
        %218 = vmatprep.subr.mxu0 0.0
        %219 = vmatpush1.msra.mxu0 0.0
        %220 = vmatprep.subr.mxu0 0.0
        %221 = vmatpush1.msra.mxu0 0.0
        %222 = vmatprep.subr.mxu0 0.0
        %223 = vmatpush1.msra.mxu0 0.0
        %224 = vmatprep.subr.mxu0 0.0
        %225 = vmatpush1.msra.mxu0 0.0
        %226 = vmatprep.subr.mxu0 0.0
        %227 = vmatpush1.msra.mxu0 0.0
        %228 = vmatprep.subr.mxu0 0.0
        %229 = vmatpush1.msra.mxu0 0.0
        %230 = vmatprep.subr.mxu0 0.0
        %231 = vmatpush1.msra.mxu0 0.0
        %232 = vmatprep.subr.mxu0 0.0
        %233 = vmatpush1.msra.mxu0 0.0
        %234 = vmatprep.subr.mxu0 0.0
        %235 = vmatpush1.msra.mxu0 0.0
        %236 = vmatprep.subr.mxu0 0.0
        %237 = vmatpush1.msra.mxu0 0.0
        %238 = vmatprep.subr.mxu0 0.0
        %239 = vmatpush1.msra.mxu0 0.0
        %240 = vmatprep.subr.mxu0 0.0
        %241 = vmatpush1.msra.mxu0 0.0
        %242 = vmatprep.subr.mxu0 0.0
        %243 = vmatpush1.msra.mxu0 0.0
        %244 = vmatprep.subr.mxu0 0.0
        %245 = vmatpush1.msra.mxu0 0.0
        %246 = vmatprep.subr.mxu0 0.0
        %247 = vmatpush1.msra.mxu0 0.0
        %248 = vmatprep.subr.mxu0 0.0
        %249 = vmatpush1.msra.mxu0 0.0
        %250 = vmatprep.subr.mxu0 0.0
        %251 = vmatpush1.msra.mxu0 0.0
        %252 = vmatprep.subr.mxu0 0.0
        %253 = vmatpush1.msra.mxu0 0.0
        %254 = vmatprep.subr.mxu0 0.0
        %255 = vmatpush1.msra.mxu0 0.0
        %256 = vmatprep.subr.mxu0 0.0
        %257 = vmatpush1.msra.mxu0 0.0
        %258 = vmatprep.subr.mxu0 0.0
        %259 = vmatpush1.msra.mxu0 0.0
        %260 = vmatprep.subr.mxu0 0.0
        %261 = vmatpush1.msra.mxu0 0.0
        %262 = vmatprep.subr.mxu0 0.0
        %263 = vmatpush1.msra.mxu0 0.0
        %264 = vmatprep.mubr.f32.mxu0 0.0
        %265 = vmatmul.mubr.f32.gmra.mrb[0].mxu0 %v195
        %v266 = vpop.f32.mrb[0].mxu0
        %v267 = vadd.f32 0.0, %v266
        %v268 = vpop.f32.mrb[0].mxu0
        %269 = vmatprep.mubr.f32.mxu0 0.0
        %270 = vmatmul.mubr.f32.gmra.mrb[0].mxu0 %v198
        %v271 = vpop.f32.mrb[0].mxu0
        %v272 = vadd.f32 0.0, %v271
        %v273 = vpop.f32.mrb[0].mxu0
        %274 = vdwg.mxu0
        %v275 = vld [vmem:[%s2] sm:$0xff]
        %v277 = vsel %vm193, %v275, 0
        %279 = vmatprep.subr.mxu0 0.0
        %280 = vmatpush1.msra.mxu0 %v267
        %281 = vmatprep.subr.mxu0 0.0
        %282 = vmatpush1.msra.mxu0 %v272
        %283 = vmatprep.subr.mxu0 0.0
        %284 = vmatpush1.msra.mxu0 0.0
        %285 = vmatprep.subr.mxu0 0.0
        %286 = vmatpush1.msra.mxu0 0.0
        %287 = vmatprep.subr.mxu0 0.0
        %288 = vmatpush1.msra.mxu0 0.0
        %289 = vmatprep.subr.mxu0 0.0
        %290 = vmatpush1.msra.mxu0 0.0
        %291 = vmatprep.subr.mxu0 0.0
        %292 = vmatpush1.msra.mxu0 0.0
        %293 = vmatprep.subr.mxu0 0.0
        %294 = vmatpush1.msra.mxu0 0.0
        %295 = vmatprep.subr.mxu0 0.0
        %296 = vmatpush1.msra.mxu0 0.0
        %297 = vmatprep.subr.mxu0 0.0
        %298 = vmatpush1.msra.mxu0 0.0
        %299 = vmatprep.subr.mxu0 0.0
        %300 = vmatpush1.msra.mxu0 0.0
        %301 = vmatprep.subr.mxu0 0.0
        %302 = vmatpush1.msra.mxu0 0.0
        %303 = vmatprep.subr.mxu0 0.0
        %304 = vmatpush1.msra.mxu0 0.0
        %305 = vmatprep.subr.mxu0 0.0
        %306 = vmatpush1.msra.mxu0 0.0
        %307 = vmatprep.subr.mxu0 0.0
        %308 = vmatpush1.msra.mxu0 0.0
        %309 = vmatprep.subr.mxu0 0.0
        %310 = vmatpush1.msra.mxu0 0.0
        %311 = vmatprep.subr.mxu0 0.0
        %312 = vmatpush1.msra.mxu0 0.0
        %313 = vmatprep.subr.mxu0 0.0
        %314 = vmatpush1.msra.mxu0 0.0
        %315 = vmatprep.subr.mxu0 0.0
        %316 = vmatpush1.msra.mxu0 0.0
        %317 = vmatprep.subr.mxu0 0.0
        %318 = vmatpush1.msra.mxu0 0.0
        %319 = vmatprep.subr.mxu0 0.0
        %320 = vmatpush1.msra.mxu0 0.0
        %321 = vmatprep.subr.mxu0 0.0
        %322 = vmatpush1.msra.mxu0 0.0
        %323 = vmatprep.subr.mxu0 0.0
        %324 = vmatpush1.msra.mxu0 0.0
        %325 = vmatprep.subr.mxu0 0.0
        %326 = vmatpush1.msra.mxu0 0.0
        %327 = vmatprep.subr.mxu0 0.0
        %328 = vmatpush1.msra.mxu0 0.0
        %329 = vmatprep.subr.mxu0 0.0
        %330 = vmatpush1.msra.mxu0 0.0
        %331 = vmatprep.subr.mxu0 0.0
        %332 = vmatpush1.msra.mxu0 0.0
        %333 = vmatprep.subr.mxu0 0.0
        %334 = vmatpush1.msra.mxu0 0.0
        %335 = vmatprep.subr.mxu0 0.0
        %336 = vmatpush1.msra.mxu0 0.0
        %337 = vmatprep.subr.mxu0 0.0
        %338 = vmatpush1.msra.mxu0 0.0
        %339 = vmatprep.subr.mxu0 0.0
        %340 = vmatpush1.msra.mxu0 0.0
        %341 = vmatprep.subr.mxu0 0.0
        %342 = vmatpush1.msra.mxu0 0.0
        %343 = vmatprep.mubr.f32.mxu0 0.0
        %344 = vmatmul.mubr.f32.gmra.mrb[0].mxu0 %v277
        %v345 = vpop.f32.mrb[0].mxu0
        %v346 = vadd.f32 0.0, %v345
        %v347 = vpop.f32.mrb[0].mxu0
        %348 = vdwg.mxu0
        %vm349 = vcmask 64512
        %350 = vst.msk [vmem:[%s188] sm:$0xff] %vm349, %v346
        %s351 = sand.u32 %s96, 1
        %s352 = scalar_lea.sflag [#allocation4], %s351
        %s353 = sand.u32 %s96, 1
        %s354 = smul.addr %s353, 8
        %s355 = scalar_lea.vmem [#allocation5], %s354
        // Predicated region
        $region37: #{tpu_custom_call.1} parent=31 // pred_check
          %p356 = pneg %p106
        $region38: #{tpu_custom_call.1} parent=31 // pred_check_branch
          %358 = sbr.rel (%p356) target = $region40
        $region39: #{tpu_custom_call.1} parent=31 // pred_region
          %s360 = ssub.s32 128, 128
          %361 = vsyncadd %s352, %s360
          %s362 = smul.addr %s20, 128
          %s363 = scalar_lea.hbm %s3, %s362
          %s365 = sshll.u32 %s355, 4
          %s366 = int_to_ptr.vmem [resolvable:$true] %s365
          %368 = dma.vmem_to_hbm [thread:$0]  %s366, 128, %s363, %s352
        $region40: #{tpu_custom_call.1} parent=31 // pred_fallthru
          _
      $region32: #{tpu_custom_call.1} parent=5 // pred_fallthru
        _
      %p369 = scmp.le.s32.totalorder 2, %s15
      // Predicated region
      $region41: #{tpu_custom_call.1} parent=5 // pred_check
        %p370 = pneg %p369
      $region42: #{tpu_custom_call.1} parent=5 // pred_check_branch
        %372 = sbr.rel (%p370) target = $region44
      $region43: #{tpu_custom_call.1} parent=5 // pred_region
        %s373 = ssub.s32 %s15, 2
        // Predicated region
        $region45: #{tpu_custom_call.1} parent=43 // pred_check
          %p374 = pneg %p112
        $region46: #{tpu_custom_call.1} parent=43 // pred_check_branch
          %376 = sbr.rel (%p374) target = $region48
        $region47: #{tpu_custom_call.1} parent=43 // pred_region
          %s377 = sand.u32 %s97, 1
          %s378 = scalar_lea.sflag [#allocation4], %s377
          %s379 = sand.u32 %s97, 1
          %s380 = smul.addr %s379, 8
          %s381 = scalar_lea.vmem [#allocation5], %s380
          %382 = dma.done %s378, 128
        $region48: #{tpu_custom_call.1} parent=43 // pred_fallthru
          _
      $region44: #{tpu_custom_call.1} parent=5 // pred_fallthru
        _
    $region6: #{tpu_custom_call.1} parent=1 // loop_footer
      %s19 = sadd.s32 1, %s15
    $region7: #{tpu_custom_call.1} parent=1 // loop_footer_branch
      %14 = sbr.rel target = $region3
    $region8: #{tpu_custom_call.1} parent=1 // loop_exit
      _
    %383 = vsyncpa [#allocation3], 1
    %s384 = scalar_lea.sflag [#allocation3], 1
    %385 = vsyncpa %s384, 1
    %386 = vsyncpa [#allocation4], 1
    %s387 = scalar_lea.sflag [#allocation4], 1
    %388 = vsyncpa %s387, 1

</llo_original>
